<compile_context>
chip_gen: v7x
topology: tpu7x:2x2x1
jax: 0.10.0
libtpu: 0.0.40
codegen_flags: <defaults>
</compile_context>

<pallas_src>
import functools
import math

import jax
import jax.numpy as jnp
from jax import lax
from jax.experimental import pallas as pl
from jax.experimental.pallas import tpu as pltpu

_MASK_VALUE = -1e30
_VMEM_LIMIT = 32 * 1024 * 1024  # safe on v5e/v6e/v7x (<= physical 64 MiB on v7x)


# ---------------------------------------------------------------------------
# Kernel 1: fused QKV projection, N-tiled weights, q column-tiles pre-scaled
# ---------------------------------------------------------------------------
def _qkv_proj_kernel(x_ref, w_ref, b_ref, o_ref, *, n_q_tiles, scale):
    n = pl.program_id(2)                            # output-column tile index
    acc = jnp.dot(x_ref[0], w_ref[...],
                  preferred_element_type=jnp.float32) + b_ref[...]   # (R, tn) f32
    # Tiles belonging to q (first C columns) get the 1/sqrt(D) scale folded in.
    mult = jnp.where(n < n_q_tiles, jnp.float32(scale), jnp.float32(1.0))
    o_ref[0] = (acc * mult).astype(o_ref.dtype)


# ---------------------------------------------------------------------------
# Kernel 2: flash attention (causal, online softmax, lane-dense m/l scratch)
# ---------------------------------------------------------------------------
def _flash_attn_kernel(q_ref, k_ref, v_ref, o_ref, m_ref, l_ref, acc_ref, *,
                       blk, head_dim):
    qi = pl.program_id(2)
    ki = pl.program_id(3)

    @pl.when(ki == 0)
    def _init():
        m_ref[...] = jnp.full_like(m_ref, -jnp.inf)
        l_ref[...] = jnp.zeros_like(l_ref)
        acc_ref[...] = jnp.zeros_like(acc_ref)

    def _attend(apply_mask):
        q = q_ref[0]                                # (blk, D) bf16, already scaled
        k = k_ref[0]                                # (blk, D) bf16
        v = v_ref[0]                                # (blk, D) bf16

        # q @ k^T contracted on D without materializing a transpose.
        s = lax.dot_general(q, k, (((1,), (1,)), ((), ())),
                            preferred_element_type=jnp.float32)       # (blk, blk) f32

        if apply_mask:  # diagonal tile only (square tiles)
            row = lax.broadcasted_iota(jnp.int32, s.shape, 0)
            col = lax.broadcasted_iota(jnp.int32, s.shape, 1)
            s = jnp.where(col <= row, s, jnp.float32(_MASK_VALUE))

        m_prev = m_ref[...]                                           # (blk, 128)
        l_prev = l_ref[...]                                           # (blk, 128)
        m_new = jnp.maximum(m_prev, jnp.max(s, axis=-1, keepdims=True))
        alpha = jnp.exp(m_prev - m_new)                               # (blk, 128)
        # m_new is lane-replicated; tile it out to the kv width for the subtraction.
        p = jnp.exp(s - jnp.tile(m_new, (1, blk // 128)))             # (blk, blk) f32

        l_ref[...] = alpha * l_prev + jnp.sum(p, axis=-1, keepdims=True)
        acc_ref[...] = (jnp.tile(alpha, (1, head_dim // 128)) * acc_ref[...]
                        + jnp.dot(p.astype(v.dtype), v,
                                  preferred_element_type=jnp.float32))
        m_ref[...] = m_new

    # Strictly-below-diagonal tiles: no mask needed.
    @pl.when(ki < qi)
    def _below():
        _attend(apply_mask=False)

    # Diagonal tile: masked, and it is the last contributing tile -> finalize.
    @pl.when(ki == qi)
    def _diag():
        _attend(apply_mask=True)
        l = l_ref[...]
        inv = pl.reciprocal(l, approx=True)          # EUP slot
        inv = inv * (2.0 - l * inv)                  # one Newton step -> ~f32 accuracy
        o_ref[0] = (acc_ref[...]
                    * jnp.tile(inv, (1, head_dim // 128))).astype(o_ref.dtype)
    # Tiles with ki > qi are fully masked: compute skipped AND K/V DMA avoided
    # (index_map clamps their kv block index to qi, re-using the resident block).


# ---------------------------------------------------------------------------
# Kernel 3: output projection, N-tiled weights
# ---------------------------------------------------------------------------
def _linear_kernel(x_ref, w_ref, b_ref, o_ref):
    o_ref[0] = (jnp.dot(x_ref[0], w_ref[...],
                        preferred_element_type=jnp.float32)
                + b_ref[...]).astype(o_ref.dtype)


# ---------------------------------------------------------------------------
# Wrapper
# ---------------------------------------------------------------------------
def causal_self_attention(x, w_qkv, b_qkv, w_proj, b_proj, *, n_head,
                          block=256, block_rows=256, col_tile=512):
    """x: (B, T, C); w_qkv: (C, 3C); b_qkv: (3C,); w_proj: (C, C); b_proj: (C,)."""
    B, T, C = x.shape
    assert C % n_head == 0
    D = C // n_head
    assert D % 128 == 0, "head_dim must be a multiple of 128 (see TODO at top)"

    blk = min(block, T)
    blk_r = min(block_rows, T)
    assert T % blk == 0 and T % blk_r == 0 and blk % 128 == 0

    tn_qkv = min(col_tile, C)                     # must divide C so q/k/v tiles don't straddle
    tn_p = min(col_tile, C)
    assert C % tn_qkv == 0 and C % tn_p == 0
    n_q_tiles = C // tn_qkv

    out_dtype = x.dtype
    cdt = jnp.bfloat16                            # MXU / intermediate dtype
    x_b = x.astype(cdt)
    w_qkv_b = w_qkv.astype(cdt)
    w_proj_b = w_proj.astype(cdt)
    b_qkv2 = b_qkv.reshape(1, 3 * C).astype(jnp.float32)   # added to f32 accumulators
    b_proj2 = b_proj.reshape(1, C).astype(jnp.float32)

    scale = 1.0 / math.sqrt(D)

    # ---- 1) QKV projection (single (B, T, 3C) bf16 output, q tiles pre-scaled) ----
    qkv = pl.pallas_call(
        functools.partial(_qkv_proj_kernel, n_q_tiles=n_q_tiles, scale=scale),
        out_shape=jax.ShapeDtypeStruct((B, T, 3 * C), cdt),
        grid_spec=pltpu.PrefetchScalarGridSpec(
            num_scalar_prefetch=0,
            grid=(B, T // blk_r, 3 * C // tn_qkv),
            in_specs=[
                pl.BlockSpec((1, blk_r, C), lambda b, r, n: (b, r, 0)),
                pl.BlockSpec((C, tn_qkv), lambda b, r, n: (0, n)),
                pl.BlockSpec((1, tn_qkv), lambda b, r, n: (0, n)),
            ],
            out_specs=pl.BlockSpec((1, blk_r, tn_qkv), lambda b, r, n: (b, r, n)),
        ),
        compiler_params=pltpu.CompilerParams(
            dimension_semantics=("parallel", "parallel", "parallel"),
            vmem_limit_bytes=_VMEM_LIMIT),
        cost_estimate=pl.CostEstimate(
            flops=2 * B * T * C * 3 * C,
            transcendentals=0,
            bytes_accessed=(B * T * C + C * 3 * C + B * T * 3 * C) * 2 + 3 * C * 4),
    )(x_b, w_qkv_b, b_qkv2)

    # ---- 2) flash attention over (batch, head, q-tile, kv-tile) ----
    y = pl.pallas_call(
        functools.partial(_flash_attn_kernel, blk=blk, head_dim=D),
        out_shape=jax.ShapeDtypeStruct((B, T, C), cdt),
        grid_spec=pltpu.PrefetchScalarGridSpec(
            num_scalar_prefetch=0,
            grid=(B, n_head, T // blk, T // blk),
            in_specs=[
                # q / k / v are lane-slices of the single qkv buffer.
                pl.BlockSpec((1, blk, D), lambda b, h, qi, ki: (b, qi, h)),
                pl.BlockSpec((1, blk, D),
                             lambda b, h, qi, ki: (b, jnp.minimum(ki, qi), n_head + h)),
                pl.BlockSpec((1, blk, D),
                             lambda b, h, qi, ki: (b, jnp.minimum(ki, qi), 2 * n_head + h)),
            ],
            out_specs=pl.BlockSpec((1, blk, D), lambda b, h, qi, ki: (b, qi, h)),
            scratch_shapes=[
                pltpu.VMEM((blk, 128), jnp.float32),   # running max m (lane-replicated)
                pltpu.VMEM((blk, 128), jnp.float32),   # running denom l
                pltpu.VMEM((blk, D), jnp.float32),     # f32 accumulator
            ],
        ),
        compiler_params=pltpu.CompilerParams(
            dimension_semantics=("parallel", "parallel", "parallel", "arbitrary"),
            vmem_limit_bytes=_VMEM_LIMIT),
        cost_estimate=pl.CostEstimate(
            flops=2 * B * n_head * T * T * D,          # qk + pv, causal-halved
            transcendentals=B * n_head * T * T // 2,
            bytes_accessed=(3 * B * T * C + B * T * C) * 2),
    )(qkv, qkv, qkv)

    # ---- 3) output projection ----
    out = pl.pallas_call(
        _linear_kernel,
        out_shape=jax.ShapeDtypeStruct((B, T, C), out_dtype),
        grid_spec=pltpu.PrefetchScalarGridSpec(
            num_scalar_prefetch=0,
            grid=(B, T // blk_r, C // tn_p),
            in_specs=[
                pl.BlockSpec((1, blk_r, C), lambda b, r, n: (b, r, 0)),
                pl.BlockSpec((C, tn_p), lambda b, r, n: (0, n)),
                pl.BlockSpec((1, tn_p), lambda b, r, n: (0, n)),
            ],
            out_specs=pl.BlockSpec((1, blk_r, tn_p), lambda b, r, n: (b, r, n)),
        ),
        compiler_params=pltpu.CompilerParams(
            dimension_semantics=("parallel", "parallel", "parallel"),
            vmem_limit_bytes=_VMEM_LIMIT),
        cost_estimate=pl.CostEstimate(
            flops=2 * B * T * C * C,
            transcendentals=0,
            bytes_accessed=(B * T * C + C * C) * 2 + B * T * C * 4 + C * 4),
    )(y, w_proj_b, b_proj2)

    return out


# ---------------------------------------------------------------------------
# Pure-JAX f32 reference mirroring the PyTorch forward
# ---------------------------------------------------------------------------
def reference_attention(x, w_qkv, b_qkv, w_proj, b_proj, *, n_head):
    B, T, C = x.shape
    D = C // n_head
    qkv = x @ w_qkv + b_qkv
    q, k, v = jnp.split(qkv, 3, axis=-1)
    q = q.reshape(B, T, n_head, D).transpose(0, 2, 1, 3)
    k = k.reshape(B, T, n_head, D).transpose(0, 2, 1, 3)
    v = v.reshape(B, T, n_head, D).transpose(0, 2, 1, 3)
    s = jnp.einsum('bhtd,bhsd->bhts', q, k) / math.sqrt(D)
    mask = jnp.tril(jnp.ones((T, T), dtype=bool))
    s = jnp.where(mask[None, None], s, -jnp.inf)
    p = jax.nn.softmax(s, axis=-1)
    y = jnp.einsum('bhts,bhsd->bhtd', p, v)
    y = y.transpose(0, 2, 1, 3).reshape(B, T, C)
    return y @ w_proj + b_proj


if __name__ == "__main__":
    # Small-but-TPU-aligned config: head_dim = 128, T a multiple of the 256-wide
    # attention tiles so all causal-grid branches (below / diag / skipped) run.
    B, T, C, n_head = 2, 512, 256, 2

    key = jax.random.PRNGKey(0)
    kx, k1, k2, k3, k4 = jax.random.split(key, 5)

    x = jax.random.normal(kx, (B, T, C), dtype=jnp.float32)

    # nn.Linear-like uniform init; weights stored (in, out) so kernels do x @ W + b.
    bound = 1.0 / math.sqrt(C)
    w_qkv = jax.random.uniform(k1, (C, 3 * C), jnp.float32, -bound, bound)
    b_qkv = jax.random.uniform(k2, (3 * C,), jnp.float32, -bound, bound)
    w_proj = jax.random.uniform(k3, (C, C), jnp.float32, -bound, bound)
    b_proj = jax.random.uniform(k4, (C,), jnp.float32, -bound, bound)

    out = causal_self_attention(x, w_qkv, b_qkv, w_proj, b_proj, n_head=n_head)
    out = jax.block_until_ready(out)

    ref = reference_attention(x, w_qkv, b_qkv, w_proj, b_proj, n_head=n_head)
    assert out.shape == (B, T, C)
    max_err = float(jnp.max(jnp.abs(out - ref)))
    # bf16 intermediates (per perf guidance) vs. f32 reference -> looser tolerance.
    assert jnp.allclose(out, ref, atol=2e-2, rtol=2e-2), \
        f"mismatch vs reference, max abs err {max_err}"

    print("KERNEL_OK")
</pallas_src>

<mosaic_0001>
module attributes {stable_mosaic.version = 11 : i64} {
  func.func @_qkv_proj_kernel(%arg0: i32, %arg1: i32, %arg2: i32, %arg3: memref<1x256x256xbf16, #tpu.memory_space<vmem>>, %arg4: memref<256x256xbf16, #tpu.memory_space<vmem>>, %arg5: memref<1x256xf32, #tpu.memory_space<vmem>>, %arg6: memref<1x256x256xbf16, #tpu.memory_space<vmem>>) attributes {dimension_semantics = [#tpu.dimension_semantics<parallel>, #tpu.dimension_semantics<parallel>, #tpu.dimension_semantics<parallel>], iteration_bounds = array<i64: 2, 2, 3>, scalar_prefetch = 0 : i64, scratch_operands = 0 : i64, tpu.core_type = #tpu.core_type<tc>, window_params = [{transform_indices = @transform_0, window_bounds = array<i64: 1, 256, 256>}, {transform_indices = @transform_1, window_bounds = array<i64: 256, 256>}, {transform_indices = @transform_2, window_bounds = array<i64: 1, 256>}, {transform_indices = @transform_3, window_bounds = array<i64: 1, 256, 256>}]} {
    %c0 = arith.constant 0 : index
    %c0_0 = arith.constant 0 : index
    %c0_1 = arith.constant 0 : index
    %0 = vector.load %arg3[%c0, %c0_0, %c0_1] : memref<1x256x256xbf16, #tpu.memory_space<vmem>>, vector<1x256x256xbf16>
    %1 = vector.shape_cast %0 : vector<1x256x256xbf16> to vector<256x256xbf16>
    %c0_2 = arith.constant 0 : index
    %c0_3 = arith.constant 0 : index
    %2 = vector.load %arg4[%c0_2, %c0_3] : memref<256x256xbf16, #tpu.memory_space<vmem>>, vector<256x256xbf16>
    %cst = arith.constant dense<0.000000e+00> : vector<256x256xf32>
    %3 = tpu.matmul %1, %2, %cst {dimension_numbers = #tpu.dot_dimension_numbers<[1], [0], [0], [1], [0, 0, 1, 1], [], []>} : vector<256x256xbf16>, vector<256x256xbf16>, vector<256x256xf32> -> vector<256x256xf32>
    %c0_4 = arith.constant 0 : index
    %c0_5 = arith.constant 0 : index
    %4 = vector.load %arg5[%c0_4, %c0_5] : memref<1x256xf32, #tpu.memory_space<vmem>>, vector<1x256xf32>
    %5 = vector.broadcast %4 : vector<1x256xf32> to vector<256x256xf32>
    %6 = arith.addf %3, %5 : vector<256x256xf32>
    %c1_i32 = arith.constant 1 : i32
    %7 = arith.cmpi slt, %arg2, %c1_i32 : i32
    %cst_6 = arith.constant 0.0883883461 : f32
    %cst_7 = arith.constant 1.000000e+00 : f32
    %8 = arith.select %7, %cst_6, %cst_7 : f32
    %9 = vector.broadcast %8 : f32 to vector<256x256xf32>
    %10 = arith.mulf %6, %9 : vector<256x256xf32>
    %11 = arith.truncf %10 : vector<256x256xf32> to vector<256x256xbf16>
    %c0_8 = arith.constant 0 : index
    %c0_9 = arith.constant 0 : index
    %c0_10 = arith.constant 0 : index
    %12 = vector.load %arg6[%c0_8, %c0_9, %c0_10] : memref<1x256x256xbf16, #tpu.memory_space<vmem>>, vector<1x256x256xbf16>
    %13 = vector.shape_cast %12 : vector<1x256x256xbf16> to vector<256x256xbf16>
    %14 = vector.shape_cast %11 : vector<256x256xbf16> to vector<1x256x256xbf16>
    tpu.vector_store %arg6[%c0_8, %c0_9, %c0_10], %14 {strides = array<i32>} : memref<1x256x256xbf16, #tpu.memory_space<vmem>>, vector<1x256x256xbf16>,
    return
  }
  func.func @transform_0(%arg0: i32, %arg1: i32, %arg2: i32) -> (i32, i32, i32) {
    %c0_i32 = arith.constant 0 : i32
    %c0_i32_0 = arith.constant 0 : i32
    return %arg0, %arg1, %c0_i32 : i32, i32, i32
  }
  func.func @transform_1(%arg0: i32, %arg1: i32, %arg2: i32) -> (i32, i32) {
    %c0_i32 = arith.constant 0 : i32
    %c0_i32_0 = arith.constant 0 : i32
    return %c0_i32, %arg2 : i32, i32
  }
  func.func @transform_2(%arg0: i32, %arg1: i32, %arg2: i32) -> (i32, i32) {
    %c0_i32 = arith.constant 0 : i32
    %c0_i32_0 = arith.constant 0 : i32
    return %c0_i32, %arg2 : i32, i32
  }
  func.func @transform_3(%arg0: i32, %arg1: i32, %arg2: i32) -> (i32, i32, i32) {
    %c0_i32 = arith.constant 0 : i32
    return %arg0, %arg1, %arg2 : i32, i32, i32
  }
}

</mosaic_0001>

<llo_original>
// kernel: tpu_custom_call.1
$region0: #{tpu_custom_call.1}
  #allocation0 [shape = 'u32[]', space=smem, size = 0x4, offset = 0x4, fixed_abs, tag = 'smem constant byte address 0x4 - core index']
  #allocation1 [shape = 'u32[144,128]{1,0:T(1,128)}', space=vmem, size = 0x12000, scoped, tag = 'internal scratch']
  %s0 = inlined_call_operand.hbm [shape: bf16[2,512,256], index: 0, kind: input, shape index: {}]
  %s1 = inlined_call_operand.hbm [shape: bf16[256,768], index: 1, kind: input, shape index: {}]
  %s2 = inlined_call_operand.hbm [shape: f32[1,768], index: 2, kind: input, shape index: {}]
  %s3 = inlined_call_operand.hbm [shape: bf16[2,512,768], index: 3, kind: output, shape index: {}]
  %s4 = sld [smem:[#allocation0]]
  $region57: #{tpu_custom_call.1} parent=0
    _
  %s6 = ssub.s32 1, %s4
  %s7 = scalar_select 0, %s6, %s4
  $region1: #{tpu_custom_call.1} parent=0
    #allocation2 [shape = 'u8[262144]{0}', space=vmem, size = 0x40000, scoped, tag = 'input window, operand 0']
    #allocation3 [shape = 's32[2]{0}', space=sflag, size = 0x8, scoped, tag = 'scoped memory for tpu_custom_call.1']
    #allocation4 [shape = 's32[2]{0}', space=sflag, size = 0x8, scoped, tag = 'scoped memory for tpu_custom_call.1']
    #allocation5 [shape = 'u8[262144]{0}', space=vmem, size = 0x40000, scoped, tag = 'input window, operand 1']
    #allocation6 [shape = 's32[2]{0}', space=sflag, size = 0x8, scoped, tag = 'scoped memory for tpu_custom_call.1']
    #allocation7 [shape = 'u8[2048]{0}', space=vmem, size = 0x800, scoped, tag = 'input window, operand 2']
    #allocation8 [shape = 'u8[262144]{0}', space=vmem, size = 0x40000, scoped, tag = 'output window, operand 0']
    %8 = vsyncpa [#allocation3], 0
    %s9 = scalar_lea.sflag [#allocation3], 1
    %10 = vsyncpa %s9, 0
    %11 = vsyncpa [#allocation6], 0
    %s12 = scalar_lea.sflag [#allocation6], 1
    %13 = vsyncpa %s12, 0
    %14 = vsyncpa [#allocation4], 0
    %s15 = scalar_lea.sflag [#allocation4], 1
    %16 = vsyncpa %s15, 0
    loop: start=0, step=1, limit=14
    $region2: #{tpu_custom_call.1} parent=1 // loop_pre_header
      _
    $region3: #{tpu_custom_call.1} parent=1 // loop_header
      %s18 = sphi 0, %s22
      %p19 = scmp.ge.s32.totalorder %s18, 14
      %s25 = sphi 0, %s44
      %s26 = sphi 0, %s40
      %s27 = sphi 0, %s36
      %s28 = sphi 0, %s25
      %s29 = sphi 0, %s26
      %s30 = sphi 0, %s27
      %s31 = sphi 0, %s28
      %s32 = sphi 0, %s29
      %s33 = sphi 0, %s30
      %s49 = sphi 0, %s51
      %s52 = sphi 0, %s49
      %s53 = sphi 0, %s52
      %s69 = sphi 0, %s53
      %s75 = sphi 0, %s77
      %s78 = sphi 0, %s75
      %s79 = sphi 0, %s78
      %s95 = sphi 0, %s79
      %s101 = sphi 0, %s103
      %s104 = sphi 0, %s101
      %s105 = sphi 0, %s104
      %s121 = sphi 0, %s105
      %s131 = sphi 0, %s133
      %s134 = sphi 0, %s131
      %s135 = sphi 0, %s134
      %s151 = sphi 0, %s135
    $region4: #{tpu_custom_call.1} parent=1 // loop_header_branch
      %21 = sbr.rel (%p19) target = $region8
    $region5: #{tpu_custom_call.1} parent=1 // loop_body
      %s23 = ssub.s32 %s18, 1
      %s24 = ssub.s32 %s18, 2
      %s34 = sadd.s32 1, %s27
      %p35 = scmp.ge.s32.totalorder %s34, 3
      %s36 = scalar_select %p35, 0, %s34
      %s37 = sadd.s32 1, %s26
      %s38 = scalar_select %p35, %s37, %s26
      %p39 = scmp.ge.s32.totalorder %s38, 2
      %s40 = scalar_select %p39, 0, %s38
      %s41 = sadd.s32 1, %s25
      %s42 = scalar_select %p39, %s41, %s25
      %p43 = scmp.ge.s32.totalorder %s42, 2
      %s44 = scalar_select %p43, 0, %s42
      %s45 = ssub.s32 %s25, %s44
      %s46 = ssub.s32 %s26, %s40
      %s47 = sor.u32 %s45, %s46
      %p48 = scmp.eq.s32.totalorder %s47, 0
      %s50 = sadd.s32 %s49, 1
      %s51 = scalar_select %p48, %s49, %s50
      %p54 = pneg %p48
      %p55 = scmp.eq.s32.totalorder %s18, 11
      %p56 = por %p54, %p55
      %p57 = scmp.ne.s32.totalorder %s49, %s52
      %p58 = scmp.eq.s32.totalorder %s18, 0
      %p59 = por %p57, %p58
      %p60 = scmp.ne.s32.totalorder %s49, %s52
      %p61 = scmp.eq.s32.totalorder %s23, 11
      %p62 = por %p60, %p61
      %p63 = scmp.ne.s32.totalorder %s52, %s53
      %p64 = scmp.eq.s32.totalorder %s23, 0
      %p65 = por %p63, %p64
      %p66 = scmp.ne.s32.totalorder %s52, %s53
      %p67 = scmp.eq.s32.totalorder %s24, 11
      %p68 = por %p66, %p67
      %p70 = scmp.ne.s32.totalorder %s53, %s69
      %p71 = scmp.eq.s32.totalorder %s24, 0
      %p72 = por %p70, %p71
      %s73 = ssub.s32 %s27, %s36
      %p74 = scmp.eq.s32.totalorder %s73, 0
      %s76 = sadd.s32 %s75, 1
      %s77 = scalar_select %p74, %s75, %s76
      %p80 = pneg %p74
      %p81 = scmp.eq.s32.totalorder %s18, 11
      %p82 = por %p80, %p81
      %p83 = scmp.ne.s32.totalorder %s75, %s78
      %p84 = scmp.eq.s32.totalorder %s18, 0
      %p85 = por %p83, %p84
      %p86 = scmp.ne.s32.totalorder %s75, %s78
      %p87 = scmp.eq.s32.totalorder %s23, 11
      %p88 = por %p86, %p87
      %p89 = scmp.ne.s32.totalorder %s78, %s79
      %p90 = scmp.eq.s32.totalorder %s23, 0
      %p91 = por %p89, %p90
      %p92 = scmp.ne.s32.totalorder %s78, %s79
      %p93 = scmp.eq.s32.totalorder %s24, 11
      %p94 = por %p92, %p93
      %p96 = scmp.ne.s32.totalorder %s79, %s95
      %p97 = scmp.eq.s32.totalorder %s24, 0
      %p98 = por %p96, %p97
      %s99 = ssub.s32 %s27, %s36
      %p100 = scmp.eq.s32.totalorder %s99, 0
      %s102 = sadd.s32 %s101, 1
      %s103 = scalar_select %p100, %s101, %s102
      %p106 = pneg %p100
      %p107 = scmp.eq.s32.totalorder %s18, 11
      %p108 = por %p106, %p107
      %p109 = scmp.ne.s32.totalorder %s101, %s104
      %p110 = scmp.eq.s32.totalorder %s18, 0
      %p111 = por %p109, %p110
      %p112 = scmp.ne.s32.totalorder %s101, %s104
      %p113 = scmp.eq.s32.totalorder %s23, 11
      %p114 = por %p112, %p113
      %p115 = scmp.ne.s32.totalorder %s104, %s105
      %p116 = scmp.eq.s32.totalorder %s23, 0
      %p117 = por %p115, %p116
      %p118 = scmp.ne.s32.totalorder %s104, %s105
      %p119 = scmp.eq.s32.totalorder %s24, 11
      %p120 = por %p118, %p119
      %p122 = scmp.ne.s32.totalorder %s105, %s121
      %p123 = scmp.eq.s32.totalorder %s24, 0
      %p124 = por %p122, %p123
      %s125 = ssub.s32 %s25, %s44
      %s126 = ssub.s32 %s26, %s40
      %s127 = sor.u32 %s125, %s126
      %s128 = ssub.s32 %s27, %s36
      %s129 = sor.u32 %s127, %s128
      %p130 = scmp.eq.s32.totalorder %s129, 0
      %s132 = sadd.s32 %s131, 1
      %s133 = scalar_select %p130, %s131, %s132
      %p136 = pneg %p130
      %p137 = scmp.eq.s32.totalorder %s18, 11
      %p138 = por %p136, %p137
      %p139 = scmp.ne.s32.totalorder %s131, %s134
      %p140 = scmp.eq.s32.totalorder %s18, 0
      %p141 = por %p139, %p140
      %p142 = scmp.ne.s32.totalorder %s131, %s134
      %p143 = scmp.eq.s32.totalorder %s23, 11
      %p144 = por %p142, %p143
      %p145 = scmp.ne.s32.totalorder %s134, %s135
      %p146 = scmp.eq.s32.totalorder %s23, 0
      %p147 = por %p145, %p146
      %p148 = scmp.ne.s32.totalorder %s134, %s135
      %p149 = scmp.eq.s32.totalorder %s24, 11
      %p150 = por %p148, %p149
      %p152 = scmp.ne.s32.totalorder %s135, %s151
      %p153 = scmp.eq.s32.totalorder %s24, 0
      %p154 = por %p152, %p153
      %p155 = scmp.le.s32.totalorder 1, %s18
      %p156 = scmp.lt.s32.totalorder %s18, 13
      %p157 = pnand %p155, %p156
      %p158 = pneg %p157
      // Predicated region
      $region9: #{tpu_custom_call.1} parent=5 // pred_check
        _
      $region10: #{tpu_custom_call.1} parent=5 // pred_check_branch
        %160 = sbr.rel (%p157) target = $region12
      $region11: #{tpu_custom_call.1} parent=5 // pred_region
        %s161 = ssub.s32 %s18, 1
      $region12: #{tpu_custom_call.1} parent=5 // pred_fallthru
        _
      %p162 = scmp.lt.s32.totalorder %s18, 12
      // Predicated region
      $region13: #{tpu_custom_call.1} parent=5 // pred_check
        %p163 = pneg %p162
      $region14: #{tpu_custom_call.1} parent=5 // pred_check_branch
        %165 = sbr.rel (%p163) target = $region16
      $region15: #{tpu_custom_call.1} parent=5 // pred_region
        // Predicated region
        $region17: #{tpu_custom_call.1} parent=15 // pred_check
          %p166 = pneg %p59
        $region18: #{tpu_custom_call.1} parent=15 // pred_check_branch
          %168 = sbr.rel (%p166) target = $region20
        $region19: #{tpu_custom_call.1} parent=15 // pred_region
          %s169 = sand.u32 %s49, 1
          %s170 = scalar_lea.sflag [#allocation3], %s169
          %s171 = sand.u32 %s49, 1
          %s172 = smul.addr %s171, 256
          %s173 = scalar_lea.vmem [#allocation2], %s172
          %s174 = smul.u32 32, %s26
          %s176 = ssub.s32 4096, 4096
          %177 = vsyncadd %s170, %s176
          %s178 = smul.addr %s174, 2
          %s179 = smul.addr %s25, 128
          %s180 = sadd.s32 %s178, %s179
          %s181 = smul.addr %s180, 64
          %s182 = scalar_lea.hbm %s0, %s181
          %s183 = sshll.u32 %s173, 4
          %s184 = int_to_ptr.vmem [resolvable:$true] %s183
          %189 = dma.hbm_to_vmem [thread:$0]  %s182, 4096, %s184, %s170, 128, 128, 8
        $region20: #{tpu_custom_call.1} parent=15 // pred_fallthru
          _
        // Predicated region
        $region21: #{tpu_custom_call.1} parent=15 // pred_check
          %p190 = pneg %p85
        $region22: #{tpu_custom_call.1} parent=15 // pred_check_branch
          %192 = sbr.rel (%p190) target = $region24
        $region23: #{tpu_custom_call.1} parent=15 // pred_region
          %s193 = sand.u32 %s18, 1
          %s194 = scalar_lea.sflag [#allocation6], %s193
          %s195 = sand.u32 %s75, 1
          %s196 = smul.addr %s195, 256
          %s197 = scalar_lea.vmem [#allocation5], %s196
          %s198 = smul.u32 2, %s27
          %s200 = ssub.s32 4096, 4096
          %201 = vsyncadd %s194, %s200
          %s202 = smul.addr %s198, 64
          %s203 = scalar_lea.hbm %s1, %s202
          %s204 = sshll.u32 %s197, 4
          %s205 = int_to_ptr.vmem [resolvable:$true] %s204
          %210 = dma.hbm_to_vmem [thread:$0]  %s203, 4096, %s205, %s194, 384, 128, 8
        $region24: #{tpu_custom_call.1} parent=15 // pred_fallthru
          _
        // Predicated region
        $region25: #{tpu_custom_call.1} parent=15 // pred_check
          %p211 = pneg %p111
        $region26: #{tpu_custom_call.1} parent=15 // pred_check_branch
          %213 = sbr.rel (%p211) target = $region28
        $region27: #{tpu_custom_call.1} parent=15 // pred_region
          %s214 = sand.u32 %s18, 1
          %s215 = scalar_lea.sflag [#allocation6], %s214
          %s216 = sand.u32 %s101, 1
          %s217 = smul.addr %s216, 2
          %s218 = scalar_lea.vmem [#allocation7], %s217
          %s219 = smul.u32 2, %s27
          %s221 = ssub.s32 32, 32
          %222 = vsyncadd %s215, %s221
          %s223 = smul.addr %s219, 16
          %s224 = scalar_lea.hbm %s2, %s223
          %s226 = sshll.u32 %s218, 4
          %s227 = int_to_ptr.vmem [resolvable:$true] %s226
          %229 = dma.hbm_to_vmem [thread:$0]  %s224, 32, %s227, %s215
        $region28: #{tpu_custom_call.1} parent=15 // pred_fallthru
          _
      $region16: #{tpu_custom_call.1} parent=5 // pred_fallthru
        _
      %p230 = scmp.le.s32.totalorder 1, %s18
      %p231 = scmp.lt.s32.totalorder %s18, 13
      %p232 = pnand %p230, %p231
      %p233 = pneg %p232
      // Predicated region
      $region29: #{tpu_custom_call.1} parent=5 // pred_check
        _
      $region30: #{tpu_custom_call.1} parent=5 // pred_check_branch
        %235 = sbr.rel (%p232) target = $region32
      $region31: #{tpu_custom_call.1} parent=5 // pred_region
        %s236 = ssub.s32 %s18, 1
        %s237 = sand.u32 %s52, 1
        %s238 = scalar_lea.sflag [#allocation3], %s237
        %s239 = sand.u32 %s52, 1
        %s240 = smul.addr %s239, 256
        %s241 = scalar_lea.vmem [#allocation2], %s240
        // Predicated region
        $region33: #{tpu_custom_call.1} parent=31 // pred_check
          %p242 = pneg %p65
        $region34: #{tpu_custom_call.1} parent=31 // pred_check_branch
          %244 = sbr.rel (%p242) target = $region36
        $region35: #{tpu_custom_call.1} parent=31 // pred_region
          %245 = dma.done %s238, 4096
        $region36: #{tpu_custom_call.1} parent=31 // pred_fallthru
          _
        %s246 = sand.u32 %s23, 1
        %s247 = scalar_lea.sflag [#allocation6], %s246
        %s248 = sand.u32 %s78, 1
        %s249 = smul.addr %s248, 256
        %s250 = scalar_lea.vmem [#allocation5], %s249
        // Predicated region
        $region37: #{tpu_custom_call.1} parent=31 // pred_check
          %p251 = pneg %p91
        $region38: #{tpu_custom_call.1} parent=31 // pred_check_branch
          %253 = sbr.rel (%p251) target = $region40
        $region39: #{tpu_custom_call.1} parent=31 // pred_region
          %254 = dma.done %s247, 4096
        $region40: #{tpu_custom_call.1} parent=31 // pred_fallthru
          _
        %s255 = sand.u32 %s23, 1
        %s256 = scalar_lea.sflag [#allocation6], %s255
        %s257 = sand.u32 %s104, 1
        %s258 = smul.addr %s257, 2
        %s259 = scalar_lea.vmem [#allocation7], %s258
        // Predicated region
        $region41: #{tpu_custom_call.1} parent=31 // pred_check
          %p260 = pneg %p117
        $region42: #{tpu_custom_call.1} parent=31 // pred_check_branch
          %262 = sbr.rel (%p260) target = $region44
        $region43: #{tpu_custom_call.1} parent=31 // pred_region
          %263 = dma.done %s256, 32
        $region44: #{tpu_custom_call.1} parent=31 // pred_fallthru
          _
        %s264 = sand.u32 %s52, 1
        %s265 = scalar_lea.sflag [#allocation3], %s264
        %s266 = sand.u32 %s52, 1
        %s267 = smul.addr %s266, 256
        %s268 = scalar_lea.vmem [#allocation2], %s267
        %p269 = pneg %p65
        %p270 = pneg %p62
        %s271 = sand.u32 %s23, 1
        %s272 = scalar_lea.sflag [#allocation6], %s271
        %s273 = sand.u32 %s78, 1
        %s274 = smul.addr %s273, 256
        %s275 = scalar_lea.vmem [#allocation5], %s274
        %p276 = pneg %p91
        %p277 = pneg %p88
        %s278 = sand.u32 %s23, 1
        %s279 = scalar_lea.sflag [#allocation6], %s278
        %s280 = sand.u32 %s104, 1
        %s281 = smul.addr %s280, 2
        %s282 = scalar_lea.vmem [#allocation7], %s281
        %p283 = pneg %p117
        %p284 = pneg %p114
        %p285 = pneg %p147
        %p286 = pneg %p144
        %s287 = sand.u32 %s134, 1
        %s288 = scalar_lea.sflag [#allocation4], %s287
        %s289 = sand.u32 %s134, 1
        %s290 = smul.addr %s289, 256
        %s291 = scalar_lea.vmem [#allocation8], %s290
        %s292 = smul.u32 32, %s29
        %s293 = smul.u32 2, %s30
        %s294 = smul.u32 2, %s30
        %s295 = smul.u32 32, %s29
        %s296 = smul.u32 2, %s30
        %v297 = vld [vmem:[%s241] sm:$0xff]
        %v298 = vld [vmem:[%s241 + $0x8] sm:$0xff]
        %v299 = vld [vmem:[%s241 + $0x10] sm:$0xff]
        %v300 = vld [vmem:[%s241 + $0x18] sm:$0xff]
        %v301 = vld [vmem:[%s241 + $0x20] sm:$0xff]
        %v302 = vld [vmem:[%s241 + $0x28] sm:$0xff]
        %v303 = vld [vmem:[%s241 + $0x30] sm:$0xff]
        %v304 = vld [vmem:[%s241 + $0x38] sm:$0xff]
        %v305 = vld [vmem:[%s241 + $0x40] sm:$0xff]
        %v306 = vld [vmem:[%s241 + $0x48] sm:$0xff]
        %v307 = vld [vmem:[%s241 + $0x50] sm:$0xff]
        %v308 = vld [vmem:[%s241 + $0x58] sm:$0xff]
        %v309 = vld [vmem:[%s241 + $0x60] sm:$0xff]
        %v310 = vld [vmem:[%s241 + $0x68] sm:$0xff]
        %v311 = vld [vmem:[%s241 + $0x70] sm:$0xff]
        %v312 = vld [vmem:[%s241 + $0x78] sm:$0xff]
        %v313 = vld [vmem:[%s241 + $0x80] sm:$0xff]
        %v314 = vld [vmem:[%s241 + $0x88] sm:$0xff]
        %v315 = vld [vmem:[%s241 + $0x90] sm:$0xff]
        %v316 = vld [vmem:[%s241 + $0x98] sm:$0xff]
        %v317 = vld [vmem:[%s241 + $0xa0] sm:$0xff]
        %v318 = vld [vmem:[%s241 + $0xa8] sm:$0xff]
        %v319 = vld [vmem:[%s241 + $0xb0] sm:$0xff]
        %v320 = vld [vmem:[%s241 + $0xb8] sm:$0xff]
        %v321 = vld [vmem:[%s241 + $0xc0] sm:$0xff]
        %v322 = vld [vmem:[%s241 + $0xc8] sm:$0xff]
        %v323 = vld [vmem:[%s241 + $0xd0] sm:$0xff]
        %v324 = vld [vmem:[%s241 + $0xd8] sm:$0xff]
        %v325 = vld [vmem:[%s241 + $0xe0] sm:$0xff]
        %v326 = vld [vmem:[%s241 + $0xe8] sm:$0xff]
        %v327 = vld [vmem:[%s241 + $0xf0] sm:$0xff]
        %v328 = vld [vmem:[%s241 + $0xf8] sm:$0xff]
        %v329 = vld [vmem:[%s250] sm:$0xff]
        %v330 = vld [vmem:[%s250 + $0x8] sm:$0xff]
        %v331 = vld [vmem:[%s250 + $0x10] sm:$0xff]
        %v332 = vld [vmem:[%s250 + $0x18] sm:$0xff]
        %v333 = vld [vmem:[%s250 + $0x20] sm:$0xff]
        %v334 = vld [vmem:[%s250 + $0x28] sm:$0xff]
        %v335 = vld [vmem:[%s250 + $0x30] sm:$0xff]
        %v336 = vld [vmem:[%s250 + $0x38] sm:$0xff]
        %v337 = vld [vmem:[%s250 + $0x40] sm:$0xff]
        %v338 = vld [vmem:[%s250 + $0x48] sm:$0xff]
        %v339 = vld [vmem:[%s250 + $0x50] sm:$0xff]
        %v340 = vld [vmem:[%s250 + $0x58] sm:$0xff]
        %v341 = vld [vmem:[%s250 + $0x60] sm:$0xff]
        %v342 = vld [vmem:[%s250 + $0x68] sm:$0xff]
        %v343 = vld [vmem:[%s250 + $0x70] sm:$0xff]
        %v344 = vld [vmem:[%s250 + $0x78] sm:$0xff]
        %v345 = vld [vmem:[%s250 + $0x80] sm:$0xff]
        %v346 = vld [vmem:[%s250 + $0x88] sm:$0xff]
        %v347 = vld [vmem:[%s250 + $0x90] sm:$0xff]
        %v348 = vld [vmem:[%s250 + $0x98] sm:$0xff]
        %v349 = vld [vmem:[%s250 + $0xa0] sm:$0xff]
        %v350 = vld [vmem:[%s250 + $0xa8] sm:$0xff]
        %v351 = vld [vmem:[%s250 + $0xb0] sm:$0xff]
        %v352 = vld [vmem:[%s250 + $0xb8] sm:$0xff]
        %v353 = vld [vmem:[%s250 + $0xc0] sm:$0xff]
        %v354 = vld [vmem:[%s250 + $0xc8] sm:$0xff]
        %v355 = vld [vmem:[%s250 + $0xd0] sm:$0xff]
        %v356 = vld [vmem:[%s250 + $0xd8] sm:$0xff]
        %v357 = vld [vmem:[%s250 + $0xe0] sm:$0xff]
        %v358 = vld [vmem:[%s250 + $0xe8] sm:$0xff]
        %v359 = vld [vmem:[%s250 + $0xf0] sm:$0xff]
        %v360 = vld [vmem:[%s250 + $0xf8] sm:$0xff]
        %v361 = vld [vmem:[%s259] sm:$0x3]
        %v363 = vlaneseq
        %v364 = vshrl.u32 %v363, 7
        %v365 = vsub.s32 0, %v364
        %v366 = vrot.slane %v361, %v365
        %v367 = vlaneseq
        %v368 = vshrl.u32 %v367, 7
        %v369 = vsub.s32 1, %v368
        %v370 = vrot.slane %v361, %v369
        %v405 = vunpack.c.l.b16 %v297
        %v406 = vunpack.c.h.b16 %v297
        %v407 = vunpack.c.l.b16 %v298
        %v408 = vunpack.c.h.b16 %v298
        %v409 = vunpack.c.l.b16 %v299
        %v410 = vunpack.c.h.b16 %v299
        %v411 = vunpack.c.l.b16 %v300
        %v412 = vunpack.c.h.b16 %v300
        %v413 = vunpack.c.l.b16 %v301
        %v414 = vunpack.c.h.b16 %v301
        %v415 = vunpack.c.l.b16 %v302
        %v416 = vunpack.c.h.b16 %v302
        %v417 = vunpack.c.l.b16 %v303
        %v418 = vunpack.c.h.b16 %v303
        %v419 = vunpack.c.l.b16 %v304
        %v420 = vunpack.c.h.b16 %v304
        %v421 = vunpack.c.l.b16 %v305
        %v422 = vunpack.c.h.b16 %v305
        %v423 = vunpack.c.l.b16 %v306
        %v424 = vunpack.c.h.b16 %v306
        %v425 = vunpack.c.l.b16 %v307
        %v426 = vunpack.c.h.b16 %v307
        %v427 = vunpack.c.l.b16 %v308
        %v428 = vunpack.c.h.b16 %v308
        %v429 = vunpack.c.l.b16 %v309
        %v430 = vunpack.c.h.b16 %v309
        %v431 = vunpack.c.l.b16 %v310
        %v432 = vunpack.c.h.b16 %v310
        %v433 = vunpack.c.l.b16 %v311
        %v434 = vunpack.c.h.b16 %v311
        %v435 = vunpack.c.l.b16 %v312
        %v436 = vunpack.c.h.b16 %v312
        %v437 = vunpack.c.l.b16 %v313
        %v438 = vunpack.c.h.b16 %v313
        %v439 = vunpack.c.l.b16 %v314
        %v440 = vunpack.c.h.b16 %v314
        %v441 = vunpack.c.l.b16 %v315
        %v442 = vunpack.c.h.b16 %v315
        %v443 = vunpack.c.l.b16 %v316
        %v444 = vunpack.c.h.b16 %v316
        %v445 = vunpack.c.l.b16 %v317
        %v446 = vunpack.c.h.b16 %v317
        %v447 = vunpack.c.l.b16 %v318
        %v448 = vunpack.c.h.b16 %v318
        %v449 = vunpack.c.l.b16 %v319
        %v450 = vunpack.c.h.b16 %v319
        %v451 = vunpack.c.l.b16 %v320
        %v452 = vunpack.c.h.b16 %v320
        %v453 = vunpack.c.l.b16 %v321
        %v454 = vunpack.c.h.b16 %v321
        %v455 = vunpack.c.l.b16 %v322
        %v456 = vunpack.c.h.b16 %v322
        %v457 = vunpack.c.l.b16 %v323
        %v458 = vunpack.c.h.b16 %v323
        %v459 = vunpack.c.l.b16 %v324
        %v460 = vunpack.c.h.b16 %v324
        %v461 = vunpack.c.l.b16 %v325
        %v462 = vunpack.c.h.b16 %v325
        %v463 = vunpack.c.l.b16 %v326
        %v464 = vunpack.c.h.b16 %v326
        %v465 = vunpack.c.l.b16 %v327
        %v466 = vunpack.c.h.b16 %v327
        %v467 = vunpack.c.l.b16 %v328
        %v468 = vunpack.c.h.b16 %v328
        %v469 = vpack.c.b16 %v407, %v405
        %v470 = vpack.c.b16 %v408, %v406
        %v471 = vpack.c.b16 %v411, %v409
        %v472 = vpack.c.b16 %v412, %v410
        %v473 = vpack.c.b16 %v415, %v413
        %v474 = vpack.c.b16 %v416, %v414
        %v475 = vpack.c.b16 %v419, %v417
        %v476 = vpack.c.b16 %v420, %v418
        %v477 = vpack.c.b16 %v423, %v421
        %v478 = vpack.c.b16 %v424, %v422
        %v479 = vpack.c.b16 %v427, %v425
        %v480 = vpack.c.b16 %v428, %v426
        %v481 = vpack.c.b16 %v431, %v429
        %v482 = vpack.c.b16 %v432, %v430
        %v483 = vpack.c.b16 %v435, %v433
        %v484 = vpack.c.b16 %v436, %v434
        %v485 = vpack.c.b16 %v439, %v437
        %v486 = vpack.c.b16 %v440, %v438
        %v487 = vpack.c.b16 %v443, %v441
        %v488 = vpack.c.b16 %v444, %v442
        %v489 = vpack.c.b16 %v447, %v445
        %v490 = vpack.c.b16 %v448, %v446
        %v491 = vpack.c.b16 %v451, %v449
        %v492 = vpack.c.b16 %v452, %v450
        %v493 = vpack.c.b16 %v455, %v453
        %v494 = vpack.c.b16 %v456, %v454
        %v495 = vpack.c.b16 %v459, %v457
        %v496 = vpack.c.b16 %v460, %v458
        %v497 = vpack.c.b16 %v463, %v461
        %v498 = vpack.c.b16 %v464, %v462
        %v499 = vpack.c.b16 %v467, %v465
        %v500 = vpack.c.b16 %v468, %v466
        %v565 = vunpack.c.l.b16 %v329
        %v566 = vunpack.c.h.b16 %v329
        %v567 = vunpack.c.l.b16 %v330
        %v568 = vunpack.c.h.b16 %v330
        %v569 = vunpack.c.l.b16 %v331
        %v570 = vunpack.c.h.b16 %v331
        %v571 = vunpack.c.l.b16 %v332
        %v572 = vunpack.c.h.b16 %v332
        %v573 = vunpack.c.l.b16 %v333
        %v574 = vunpack.c.h.b16 %v333
        %v575 = vunpack.c.l.b16 %v334
        %v576 = vunpack.c.h.b16 %v334
        %v577 = vunpack.c.l.b16 %v335
        %v578 = vunpack.c.h.b16 %v335
        %v579 = vunpack.c.l.b16 %v336
        %v580 = vunpack.c.h.b16 %v336
        %v581 = vunpack.c.l.b16 %v337
        %v582 = vunpack.c.h.b16 %v337
        %v583 = vunpack.c.l.b16 %v338
        %v584 = vunpack.c.h.b16 %v338
        %v585 = vunpack.c.l.b16 %v339
        %v586 = vunpack.c.h.b16 %v339
        %v587 = vunpack.c.l.b16 %v340
        %v588 = vunpack.c.h.b16 %v340
        %v589 = vunpack.c.l.b16 %v341
        %v590 = vunpack.c.h.b16 %v341
        %v591 = vunpack.c.l.b16 %v342
        %v592 = vunpack.c.h.b16 %v342
        %v593 = vunpack.c.l.b16 %v343
        %v594 = vunpack.c.h.b16 %v343
        %v595 = vunpack.c.l.b16 %v344
        %v596 = vunpack.c.h.b16 %v344
        %v597 = vunpack.c.l.b16 %v345
        %v598 = vunpack.c.h.b16 %v345
        %v599 = vunpack.c.l.b16 %v346
        %v600 = vunpack.c.h.b16 %v346
        %v601 = vunpack.c.l.b16 %v347
        %v602 = vunpack.c.h.b16 %v347
        %v603 = vunpack.c.l.b16 %v348
        %v604 = vunpack.c.h.b16 %v348
        %v605 = vunpack.c.l.b16 %v349
        %v606 = vunpack.c.h.b16 %v349
        %v607 = vunpack.c.l.b16 %v350
        %v608 = vunpack.c.h.b16 %v350
        %v609 = vunpack.c.l.b16 %v351
        %v610 = vunpack.c.h.b16 %v351
        %v611 = vunpack.c.l.b16 %v352
        %v612 = vunpack.c.h.b16 %v352
        %v613 = vunpack.c.l.b16 %v353
        %v614 = vunpack.c.h.b16 %v353
        %v615 = vunpack.c.l.b16 %v354
        %v616 = vunpack.c.h.b16 %v354
        %v617 = vunpack.c.l.b16 %v355
        %v618 = vunpack.c.h.b16 %v355
        %v619 = vunpack.c.l.b16 %v356
        %v620 = vunpack.c.h.b16 %v356
        %v621 = vunpack.c.l.b16 %v357
        %v622 = vunpack.c.h.b16 %v357
        %v623 = vunpack.c.l.b16 %v358
        %v624 = vunpack.c.h.b16 %v358
        %v625 = vunpack.c.l.b16 %v359
        %v626 = vunpack.c.h.b16 %v359
        %v627 = vunpack.c.l.b16 %v360
        %v628 = vunpack.c.h.b16 %v360
        %v629 = vpack.c.b16 %v567, %v565
        %v630 = vpack.c.b16 %v568, %v566
        %v631 = vpack.c.b16 %v571, %v569
        %v632 = vpack.c.b16 %v572, %v570
        %v633 = vpack.c.b16 %v575, %v573
        %v634 = vpack.c.b16 %v576, %v574
        %v635 = vpack.c.b16 %v579, %v577
        %v636 = vpack.c.b16 %v580, %v578
        %v637 = vpack.c.b16 %v583, %v581
        %v638 = vpack.c.b16 %v584, %v582
        %v639 = vpack.c.b16 %v587, %v585
        %v640 = vpack.c.b16 %v588, %v586
        %v641 = vpack.c.b16 %v591, %v589
        %v642 = vpack.c.b16 %v592, %v590
        %v643 = vpack.c.b16 %v595, %v593
        %v644 = vpack.c.b16 %v596, %v594
        %v645 = vpack.c.b16 %v599, %v597
        %v646 = vpack.c.b16 %v600, %v598
        %v647 = vpack.c.b16 %v603, %v601
        %v648 = vpack.c.b16 %v604, %v602
        %v649 = vpack.c.b16 %v607, %v605
        %v650 = vpack.c.b16 %v608, %v606
        %v651 = vpack.c.b16 %v611, %v609
        %v652 = vpack.c.b16 %v612, %v610
        %v653 = vpack.c.b16 %v615, %v613
        %v654 = vpack.c.b16 %v616, %v614
        %v655 = vpack.c.b16 %v619, %v617
        %v656 = vpack.c.b16 %v620, %v618
        %v657 = vpack.c.b16 %v623, %v621
        %v658 = vpack.c.b16 %v624, %v622
        %v659 = vpack.c.b16 %v627, %v625
        %v660 = vpack.c.b16 %v628, %v626
        %693 = vmatprep.subr.bf16.mxu0 %v630
        %694 = vmatpush1.bf16.msra.mxu0 %v629
        %695 = vmatprep.subr.bf16.mxu0 %v632
        %696 = vmatpush1.bf16.msra.mxu0 %v631
        %697 = vmatprep.subr.bf16.mxu0 %v634
        %698 = vmatpush1.bf16.msra.mxu0 %v633
        %699 = vmatprep.subr.bf16.mxu0 %v636
        %700 = vmatpush1.bf16.msra.mxu0 %v635
        %701 = vmatprep.subr.bf16.mxu0 %v638
        %702 = vmatpush1.bf16.msra.mxu0 %v637
        %703 = vmatprep.subr.bf16.mxu0 %v640
        %704 = vmatpush1.bf16.msra.mxu0 %v639
        %705 = vmatprep.subr.bf16.mxu0 %v642
        %706 = vmatpush1.bf16.msra.mxu0 %v641
        %707 = vmatprep.subr.bf16.mxu0 %v644
        %708 = vmatpush1.bf16.msra.mxu0 %v643
        %709 = vmatprep.subr.bf16.mxu0 %v646
        %710 = vmatpush1.bf16.msra.mxu0 %v645
        %711 = vmatprep.subr.bf16.mxu0 %v648
        %712 = vmatpush1.bf16.msra.mxu0 %v647
        %713 = vmatprep.subr.bf16.mxu0 %v650
        %714 = vmatpush1.bf16.msra.mxu0 %v649
        %715 = vmatprep.subr.bf16.mxu0 %v652
        %716 = vmatpush1.bf16.msra.mxu0 %v651
        %717 = vmatprep.subr.bf16.mxu0 %v654
        %718 = vmatpush1.bf16.msra.mxu0 %v653
        %719 = vmatprep.subr.bf16.mxu0 %v656
        %720 = vmatpush1.bf16.msra.mxu0 %v655
        %721 = vmatprep.subr.bf16.mxu0 %v658
        %722 = vmatpush1.bf16.msra.mxu0 %v657
        %723 = vmatprep.subr.bf16.mxu0 %v660
        %724 = vmatpush1.bf16.msra.mxu0 %v659
        %725 = vmatprep.mubr.bf16.mxu0 %v470
        %726 = vmatmul.mubr.bf16.gmra.mrb[0].mxu0 %v469
        %v727 = vpop.f32.mrb[0].mxu0
        %v728 = vadd.f32 %v366, %v727
        %v729 = vpop.f32.mrb[0].mxu0
        %v730 = vadd.f32 %v370, %v729
        %v731 = vpop.f32.mrb[0].mxu0
        %v732 = vadd.f32 %v366, %v731
        %v733 = vpop.f32.mrb[0].mxu0
        %v734 = vadd.f32 %v370, %v733
        %735 = vmatprep.mubr.bf16.mxu0 %v472
        %736 = vmatmul.mubr.bf16.gmra.mrb[0].mxu0 %v471
        %v737 = vpop.f32.mrb[0].mxu0
        %v738 = vadd.f32 %v366, %v737
        %v739 = vpop.f32.mrb[0].mxu0
        %v740 = vadd.f32 %v370, %v739
        %v741 = vpop.f32.mrb[0].mxu0
        %v742 = vadd.f32 %v366, %v741
        %v743 = vpop.f32.mrb[0].mxu0
        %v744 = vadd.f32 %v370, %v743
        %745 = vmatprep.mubr.bf16.mxu0 %v474
        %746 = vmatmul.mubr.bf16.gmra.mrb[0].mxu0 %v473
        %v747 = vpop.f32.mrb[0].mxu0
        %v748 = vadd.f32 %v366, %v747
        %v749 = vpop.f32.mrb[0].mxu0
        %v750 = vadd.f32 %v370, %v749
        %v751 = vpop.f32.mrb[0].mxu0
        %v752 = vadd.f32 %v366, %v751
        %v753 = vpop.f32.mrb[0].mxu0
        %v754 = vadd.f32 %v370, %v753
        %755 = vmatprep.mubr.bf16.mxu0 %v476
        %756 = vmatmul.mubr.bf16.gmra.mrb[0].mxu0 %v475
        %v757 = vpop.f32.mrb[0].mxu0
        %v758 = vadd.f32 %v366, %v757
        %v759 = vpop.f32.mrb[0].mxu0
        %v760 = vadd.f32 %v370, %v759
        %v761 = vpop.f32.mrb[0].mxu0
        %v762 = vadd.f32 %v366, %v761
        %v763 = vpop.f32.mrb[0].mxu0
        %v764 = vadd.f32 %v370, %v763
        %765 = vmatprep.mubr.bf16.mxu0 %v478
        %766 = vmatmul.mubr.bf16.gmra.mrb[0].mxu0 %v477
        %v767 = vpop.f32.mrb[0].mxu0
        %v768 = vadd.f32 %v366, %v767
        %v769 = vpop.f32.mrb[0].mxu0
        %v770 = vadd.f32 %v370, %v769
        %v771 = vpop.f32.mrb[0].mxu0
        %v772 = vadd.f32 %v366, %v771
        %v773 = vpop.f32.mrb[0].mxu0
        %v774 = vadd.f32 %v370, %v773
        %775 = vmatprep.mubr.bf16.mxu0 %v480
        %776 = vmatmul.mubr.bf16.gmra.mrb[0].mxu0 %v479
        %v777 = vpop.f32.mrb[0].mxu0
        %v778 = vadd.f32 %v366, %v777
        %v779 = vpop.f32.mrb[0].mxu0
        %v780 = vadd.f32 %v370, %v779
        %v781 = vpop.f32.mrb[0].mxu0
        %v782 = vadd.f32 %v366, %v781
        %v783 = vpop.f32.mrb[0].mxu0
        %v784 = vadd.f32 %v370, %v783
        %785 = vmatprep.mubr.bf16.mxu0 %v482
        %786 = vmatmul.mubr.bf16.gmra.mrb[0].mxu0 %v481
        %v787 = vpop.f32.mrb[0].mxu0
        %v788 = vadd.f32 %v366, %v787
        %v789 = vpop.f32.mrb[0].mxu0
        %v790 = vadd.f32 %v370, %v789
        %v791 = vpop.f32.mrb[0].mxu0
        %v792 = vadd.f32 %v366, %v791
        %v793 = vpop.f32.mrb[0].mxu0
        %v794 = vadd.f32 %v370, %v793
        %795 = vmatprep.mubr.bf16.mxu0 %v484
        %796 = vmatmul.mubr.bf16.gmra.mrb[0].mxu0 %v483
        %v797 = vpop.f32.mrb[0].mxu0
        %v798 = vadd.f32 %v366, %v797
        %v799 = vpop.f32.mrb[0].mxu0
        %v800 = vadd.f32 %v370, %v799
        %v801 = vpop.f32.mrb[0].mxu0
        %v802 = vadd.f32 %v366, %v801
        %v803 = vpop.f32.mrb[0].mxu0
        %v804 = vadd.f32 %v370, %v803
        %805 = vmatprep.mubr.bf16.mxu0 %v486
        %806 = vmatmul.mubr.bf16.gmra.mrb[0].mxu0 %v485
        %v807 = vpop.f32.mrb[0].mxu0
        %v808 = vadd.f32 %v366, %v807
        %v809 = vpop.f32.mrb[0].mxu0
        %v810 = vadd.f32 %v370, %v809
        %v811 = vpop.f32.mrb[0].mxu0
        %v812 = vadd.f32 %v366, %v811
        %v813 = vpop.f32.mrb[0].mxu0
        %v814 = vadd.f32 %v370, %v813
        %815 = vmatprep.mubr.bf16.mxu0 %v488
        %816 = vmatmul.mubr.bf16.gmra.mrb[0].mxu0 %v487
        %v817 = vpop.f32.mrb[0].mxu0
        %v818 = vadd.f32 %v366, %v817
        %v819 = vpop.f32.mrb[0].mxu0
        %v820 = vadd.f32 %v370, %v819
        %v821 = vpop.f32.mrb[0].mxu0
        %v822 = vadd.f32 %v366, %v821
        %v823 = vpop.f32.mrb[0].mxu0
        %v824 = vadd.f32 %v370, %v823
        %825 = vmatprep.mubr.bf16.mxu0 %v490
        %826 = vmatmul.mubr.bf16.gmra.mrb[0].mxu0 %v489
        %v827 = vpop.f32.mrb[0].mxu0
        %v828 = vadd.f32 %v366, %v827
        %v829 = vpop.f32.mrb[0].mxu0
        %v830 = vadd.f32 %v370, %v829
        %v831 = vpop.f32.mrb[0].mxu0
        %v832 = vadd.f32 %v366, %v831
        %v833 = vpop.f32.mrb[0].mxu0
        %v834 = vadd.f32 %v370, %v833
        %835 = vmatprep.mubr.bf16.mxu0 %v492
        %836 = vmatmul.mubr.bf16.gmra.mrb[0].mxu0 %v491
        %v837 = vpop.f32.mrb[0].mxu0
        %v838 = vadd.f32 %v366, %v837
        %v839 = vpop.f32.mrb[0].mxu0
        %v840 = vadd.f32 %v370, %v839
        %v841 = vpop.f32.mrb[0].mxu0
        %v842 = vadd.f32 %v366, %v841
        %v843 = vpop.f32.mrb[0].mxu0
        %v844 = vadd.f32 %v370, %v843
        %845 = vmatprep.mubr.bf16.mxu0 %v494
        %846 = vmatmul.mubr.bf16.gmra.mrb[0].mxu0 %v493
        %v847 = vpop.f32.mrb[0].mxu0
        %v848 = vadd.f32 %v366, %v847
        %v849 = vpop.f32.mrb[0].mxu0
        %v850 = vadd.f32 %v370, %v849
        %v851 = vpop.f32.mrb[0].mxu0
        %v852 = vadd.f32 %v366, %v851
        %v853 = vpop.f32.mrb[0].mxu0
        %v854 = vadd.f32 %v370, %v853
        %855 = vmatprep.mubr.bf16.mxu0 %v496
        %856 = vmatmul.mubr.bf16.gmra.mrb[0].mxu0 %v495
        %v857 = vpop.f32.mrb[0].mxu0
        %v858 = vadd.f32 %v366, %v857
        %v859 = vpop.f32.mrb[0].mxu0
        %v860 = vadd.f32 %v370, %v859
        %v861 = vpop.f32.mrb[0].mxu0
        %v862 = vadd.f32 %v366, %v861
        %v863 = vpop.f32.mrb[0].mxu0
        %v864 = vadd.f32 %v370, %v863
        %865 = vmatprep.mubr.bf16.mxu0 %v498
        %866 = vmatmul.mubr.bf16.gmra.mrb[0].mxu0 %v497
        %v867 = vpop.f32.mrb[0].mxu0
        %v868 = vadd.f32 %v366, %v867
        %v869 = vpop.f32.mrb[0].mxu0
        %v870 = vadd.f32 %v370, %v869
        %v871 = vpop.f32.mrb[0].mxu0
        %v872 = vadd.f32 %v366, %v871
        %v873 = vpop.f32.mrb[0].mxu0
        %v874 = vadd.f32 %v370, %v873
        %875 = vmatprep.mubr.bf16.mxu0 %v500
        %876 = vmatmul.mubr.bf16.gmra.mrb[0].mxu0 %v499
        %v877 = vpop.f32.mrb[0].mxu0
        %v878 = vadd.f32 %v366, %v877
        %v879 = vpop.f32.mrb[0].mxu0
        %v880 = vadd.f32 %v370, %v879
        %v881 = vpop.f32.mrb[0].mxu0
        %v882 = vadd.f32 %v366, %v881
        %v883 = vpop.f32.mrb[0].mxu0
        %v884 = vadd.f32 %v370, %v883
        %885 = vdwg.mxu0
        %p886 = scmp.lt.s32.totalorder %s30, 1
        %s887 = scalar_select %p886, 0.088388346, 1.0
        %v888 = vstv %s887
        %v889 = vmul.f32 %v728, %v888
        %v890 = vmul.f32 %v730, %v888
        %v891 = vmul.f32 %v732, %v888
        %v892 = vmul.f32 %v734, %v888
        %v893 = vmul.f32 %v738, %v888
        %v894 = vmul.f32 %v740, %v888
        %v895 = vmul.f32 %v742, %v888
        %v896 = vmul.f32 %v744, %v888
        %v897 = vmul.f32 %v748, %v888
        %v898 = vmul.f32 %v750, %v888
        %v899 = vmul.f32 %v752, %v888
        %v900 = vmul.f32 %v754, %v888
        %v901 = vmul.f32 %v758, %v888
        %v902 = vmul.f32 %v760, %v888
        %v903 = vmul.f32 %v762, %v888
        %v904 = vmul.f32 %v764, %v888
        %v905 = vmul.f32 %v768, %v888
        %v906 = vmul.f32 %v770, %v888
        %v907 = vmul.f32 %v772, %v888
        %v908 = vmul.f32 %v774, %v888
        %v909 = vmul.f32 %v778, %v888
        %v910 = vmul.f32 %v780, %v888
        %v911 = vmul.f32 %v782, %v888
        %v912 = vmul.f32 %v784, %v888
        %v913 = vmul.f32 %v788, %v888
        %v914 = vmul.f32 %v790, %v888
        %v915 = vmul.f32 %v792, %v888
        %v916 = vmul.f32 %v794, %v888
        %v917 = vmul.f32 %v798, %v888
        %v918 = vmul.f32 %v800, %v888
        %v919 = vmul.f32 %v802, %v888
        %v920 = vmul.f32 %v804, %v888
        %v921 = vmul.f32 %v808, %v888
        %v922 = vmul.f32 %v810, %v888
        %v923 = vmul.f32 %v812, %v888
        %v924 = vmul.f32 %v814, %v888
        %v925 = vmul.f32 %v818, %v888
        %v926 = vmul.f32 %v820, %v888
        %v927 = vmul.f32 %v822, %v888
        %v928 = vmul.f32 %v824, %v888
        %v929 = vmul.f32 %v828, %v888
        %v930 = vmul.f32 %v830, %v888
        %v931 = vmul.f32 %v832, %v888
        %v932 = vmul.f32 %v834, %v888
        %v933 = vmul.f32 %v838, %v888
        %v934 = vmul.f32 %v840, %v888
        %v935 = vmul.f32 %v842, %v888
        %v936 = vmul.f32 %v844, %v888
        %v937 = vmul.f32 %v848, %v888
        %v938 = vmul.f32 %v850, %v888
        %v939 = vmul.f32 %v852, %v888
        %v940 = vmul.f32 %v854, %v888
        %v941 = vmul.f32 %v858, %v888
        %v942 = vmul.f32 %v860, %v888
        %v943 = vmul.f32 %v862, %v888
        %v944 = vmul.f32 %v864, %v888
        %v945 = vmul.f32 %v868, %v888
        %v946 = vmul.f32 %v870, %v888
        %v947 = vmul.f32 %v872, %v888
        %v948 = vmul.f32 %v874, %v888
        %v949 = vmul.f32 %v878, %v888
        %v950 = vmul.f32 %v880, %v888
        %v951 = vmul.f32 %v882, %v888
        %v952 = vmul.f32 %v884, %v888
        %v953 = vpack.c.bf16 %v891, %v889
        %v954 = vpack.c.bf16 %v892, %v890
        %v955 = vpack.c.bf16 %v895, %v893
        %v956 = vpack.c.bf16 %v896, %v894
        %v957 = vpack.c.bf16 %v899, %v897
        %v958 = vpack.c.bf16 %v900, %v898
        %v959 = vpack.c.bf16 %v903, %v901
        %v960 = vpack.c.bf16 %v904, %v902
        %v961 = vpack.c.bf16 %v907, %v905
        %v962 = vpack.c.bf16 %v908, %v906
        %v963 = vpack.c.bf16 %v911, %v909
        %v964 = vpack.c.bf16 %v912, %v910
        %v965 = vpack.c.bf16 %v915, %v913
        %v966 = vpack.c.bf16 %v916, %v914
        %v967 = vpack.c.bf16 %v919, %v917
        %v968 = vpack.c.bf16 %v920, %v918
        %v969 = vpack.c.bf16 %v923, %v921
        %v970 = vpack.c.bf16 %v924, %v922
        %v971 = vpack.c.bf16 %v927, %v925
        %v972 = vpack.c.bf16 %v928, %v926
        %v973 = vpack.c.bf16 %v931, %v929
        %v974 = vpack.c.bf16 %v932, %v930
        %v975 = vpack.c.bf16 %v935, %v933
        %v976 = vpack.c.bf16 %v936, %v934
        %v977 = vpack.c.bf16 %v939, %v937
        %v978 = vpack.c.bf16 %v940, %v938
        %v979 = vpack.c.bf16 %v943, %v941
        %v980 = vpack.c.bf16 %v944, %v942
        %v981 = vpack.c.bf16 %v947, %v945
        %v982 = vpack.c.bf16 %v948, %v946
        %v983 = vpack.c.bf16 %v951, %v949
        %v984 = vpack.c.bf16 %v952, %v950
        %v1017 = vunpack.c.l.b16 %v953
        %v1018 = vunpack.c.l.b16 %v954
        %v1019 = vunpack.c.h.b16 %v953
        %v1020 = vunpack.c.h.b16 %v954
        %v1021 = vunpack.c.l.b16 %v955
        %v1022 = vunpack.c.l.b16 %v956
        %v1023 = vunpack.c.h.b16 %v955
        %v1024 = vunpack.c.h.b16 %v956
        %v1025 = vunpack.c.l.b16 %v957
        %v1026 = vunpack.c.l.b16 %v958
        %v1027 = vunpack.c.h.b16 %v957
        %v1028 = vunpack.c.h.b16 %v958
        %v1029 = vunpack.c.l.b16 %v959
        %v1030 = vunpack.c.l.b16 %v960
        %v1031 = vunpack.c.h.b16 %v959
        %v1032 = vunpack.c.h.b16 %v960
        %v1033 = vunpack.c.l.b16 %v961
        %v1034 = vunpack.c.l.b16 %v962
        %v1035 = vunpack.c.h.b16 %v961
        %v1036 = vunpack.c.h.b16 %v962
        %v1037 = vunpack.c.l.b16 %v963
        %v1038 = vunpack.c.l.b16 %v964
        %v1039 = vunpack.c.h.b16 %v963
        %v1040 = vunpack.c.h.b16 %v964
        %v1041 = vunpack.c.l.b16 %v965
        %v1042 = vunpack.c.l.b16 %v966
        %v1043 = vunpack.c.h.b16 %v965
        %v1044 = vunpack.c.h.b16 %v966
        %v1045 = vunpack.c.l.b16 %v967
        %v1046 = vunpack.c.l.b16 %v968
        %v1047 = vunpack.c.h.b16 %v967
        %v1048 = vunpack.c.h.b16 %v968
        %v1049 = vunpack.c.l.b16 %v969
        %v1050 = vunpack.c.l.b16 %v970
        %v1051 = vunpack.c.h.b16 %v969
        %v1052 = vunpack.c.h.b16 %v970
        %v1053 = vunpack.c.l.b16 %v971
        %v1054 = vunpack.c.l.b16 %v972
        %v1055 = vunpack.c.h.b16 %v971
        %v1056 = vunpack.c.h.b16 %v972
        %v1057 = vunpack.c.l.b16 %v973
        %v1058 = vunpack.c.l.b16 %v974
        %v1059 = vunpack.c.h.b16 %v973
        %v1060 = vunpack.c.h.b16 %v974
        %v1061 = vunpack.c.l.b16 %v975
        %v1062 = vunpack.c.l.b16 %v976
        %v1063 = vunpack.c.h.b16 %v975
        %v1064 = vunpack.c.h.b16 %v976
        %v1065 = vunpack.c.l.b16 %v977
        %v1066 = vunpack.c.l.b16 %v978
        %v1067 = vunpack.c.h.b16 %v977
        %v1068 = vunpack.c.h.b16 %v978
        %v1069 = vunpack.c.l.b16 %v979
        %v1070 = vunpack.c.l.b16 %v980
        %v1071 = vunpack.c.h.b16 %v979
        %v1072 = vunpack.c.h.b16 %v980
        %v1073 = vunpack.c.l.b16 %v981
        %v1074 = vunpack.c.l.b16 %v982
        %v1075 = vunpack.c.h.b16 %v981
        %v1076 = vunpack.c.h.b16 %v982
        %v1077 = vunpack.c.l.b16 %v983
        %v1078 = vunpack.c.l.b16 %v984
        %v1079 = vunpack.c.h.b16 %v983
        %v1080 = vunpack.c.h.b16 %v984
        %v1081 = vpack.c.b16 %v1018, %v1017
        %v1082 = vpack.c.b16 %v1020, %v1019
        %v1083 = vpack.c.b16 %v1022, %v1021
        %v1084 = vpack.c.b16 %v1024, %v1023
        %v1085 = vpack.c.b16 %v1026, %v1025
        %v1086 = vpack.c.b16 %v1028, %v1027
        %v1087 = vpack.c.b16 %v1030, %v1029
        %v1088 = vpack.c.b16 %v1032, %v1031
        %v1089 = vpack.c.b16 %v1034, %v1033
        %v1090 = vpack.c.b16 %v1036, %v1035
        %v1091 = vpack.c.b16 %v1038, %v1037
        %v1092 = vpack.c.b16 %v1040, %v1039
        %v1093 = vpack.c.b16 %v1042, %v1041
        %v1094 = vpack.c.b16 %v1044, %v1043
        %v1095 = vpack.c.b16 %v1046, %v1045
        %v1096 = vpack.c.b16 %v1048, %v1047
        %v1097 = vpack.c.b16 %v1050, %v1049
        %v1098 = vpack.c.b16 %v1052, %v1051
        %v1099 = vpack.c.b16 %v1054, %v1053
        %v1100 = vpack.c.b16 %v1056, %v1055
        %v1101 = vpack.c.b16 %v1058, %v1057
        %v1102 = vpack.c.b16 %v1060, %v1059
        %v1103 = vpack.c.b16 %v1062, %v1061
        %v1104 = vpack.c.b16 %v1064, %v1063
        %v1105 = vpack.c.b16 %v1066, %v1065
        %v1106 = vpack.c.b16 %v1068, %v1067
        %v1107 = vpack.c.b16 %v1070, %v1069
        %v1108 = vpack.c.b16 %v1072, %v1071
        %v1109 = vpack.c.b16 %v1074, %v1073
        %v1110 = vpack.c.b16 %v1076, %v1075
        %v1111 = vpack.c.b16 %v1078, %v1077
        %v1112 = vpack.c.b16 %v1080, %v1079
        %1145 = vst [vmem:[%s291] sm:$0xff] %v1081
        %1146 = vst [vmem:[%s291 + $0x8] sm:$0xff] %v1082
        %1147 = vst [vmem:[%s291 + $0x10] sm:$0xff] %v1083
        %1148 = vst [vmem:[%s291 + $0x18] sm:$0xff] %v1084
        %1149 = vst [vmem:[%s291 + $0x20] sm:$0xff] %v1085
        %1150 = vst [vmem:[%s291 + $0x28] sm:$0xff] %v1086
        %1151 = vst [vmem:[%s291 + $0x30] sm:$0xff] %v1087
        %1152 = vst [vmem:[%s291 + $0x38] sm:$0xff] %v1088
        %1153 = vst [vmem:[%s291 + $0x40] sm:$0xff] %v1089
        %1154 = vst [vmem:[%s291 + $0x48] sm:$0xff] %v1090
        %1155 = vst [vmem:[%s291 + $0x50] sm:$0xff] %v1091
        %1156 = vst [vmem:[%s291 + $0x58] sm:$0xff] %v1092
        %1157 = vst [vmem:[%s291 + $0x60] sm:$0xff] %v1093
        %1158 = vst [vmem:[%s291 + $0x68] sm:$0xff] %v1094
        %1159 = vst [vmem:[%s291 + $0x70] sm:$0xff] %v1095
        %1160 = vst [vmem:[%s291 + $0x78] sm:$0xff] %v1096
        %1161 = vst [vmem:[%s291 + $0x80] sm:$0xff] %v1097
        %1162 = vst [vmem:[%s291 + $0x88] sm:$0xff] %v1098
        %1163 = vst [vmem:[%s291 + $0x90] sm:$0xff] %v1099
        %1164 = vst [vmem:[%s291 + $0x98] sm:$0xff] %v1100
        %1165 = vst [vmem:[%s291 + $0xa0] sm:$0xff] %v1101
        %1166 = vst [vmem:[%s291 + $0xa8] sm:$0xff] %v1102
        %1167 = vst [vmem:[%s291 + $0xb0] sm:$0xff] %v1103
        %1168 = vst [vmem:[%s291 + $0xb8] sm:$0xff] %v1104
        %1169 = vst [vmem:[%s291 + $0xc0] sm:$0xff] %v1105
        %1170 = vst [vmem:[%s291 + $0xc8] sm:$0xff] %v1106
        %1171 = vst [vmem:[%s291 + $0xd0] sm:$0xff] %v1107
        %1172 = vst [vmem:[%s291 + $0xd8] sm:$0xff] %v1108
        %1173 = vst [vmem:[%s291 + $0xe0] sm:$0xff] %v1109
        %1174 = vst [vmem:[%s291 + $0xe8] sm:$0xff] %v1110
        %1175 = vst [vmem:[%s291 + $0xf0] sm:$0xff] %v1111
        %1176 = vst [vmem:[%s291 + $0xf8] sm:$0xff] %v1112
        %s1177 = sand.u32 %s134, 1
        %s1178 = scalar_lea.sflag [#allocation4], %s1177
        %s1179 = sand.u32 %s134, 1
        %s1180 = smul.addr %s1179, 256
        %s1181 = scalar_lea.vmem [#allocation8], %s1180
        // Predicated region
        $region45: #{tpu_custom_call.1} parent=31 // pred_check
          %p1182 = pneg %p144
        $region46: #{tpu_custom_call.1} parent=31 // pred_check_branch
          %1184 = sbr.rel (%p1182) target = $region48
        $region47: #{tpu_custom_call.1} parent=31 // pred_region
          %s1185 = smul.u32 32, %s29
          %s1186 = smul.u32 2, %s30
          %s1188 = ssub.s32 4096, 4096
          %1189 = vsyncadd %s1178, %s1188
          %s1190 = smul.addr %s1185, 6
          %s1191 = sadd.s32 %s1186, %s1190
          %s1192 = smul.addr %s28, 384
          %s1193 = sadd.s32 %s1191, %s1192
          %s1194 = smul.addr %s1193, 64
          %s1195 = scalar_lea.hbm %s3, %s1194
          %s1196 = sshll.u32 %s1181, 4
          %s1197 = int_to_ptr.vmem [resolvable:$true] %s1196
          %1202 = dma.vmem_to_hbm [thread:$0]  %s1197, 4096, %s1195, %s1178, 128, 384, 8
        $region48: #{tpu_custom_call.1} parent=31 // pred_fallthru
          _
      $region32: #{tpu_custom_call.1} parent=5 // pred_fallthru
        _
      %p1203 = scmp.le.s32.totalorder 2, %s18
      // Predicated region
      $region49: #{tpu_custom_call.1} parent=5 // pred_check
        %p1204 = pneg %p1203
      $region50: #{tpu_custom_call.1} parent=5 // pred_check_branch
        %1206 = sbr.rel (%p1204) target = $region52
      $region51: #{tpu_custom_call.1} parent=5 // pred_region
        %s1207 = ssub.s32 %s18, 2
        // Predicated region
        $region53: #{tpu_custom_call.1} parent=51 // pred_check
          %p1208 = pneg %p150
        $region54: #{tpu_custom_call.1} parent=51 // pred_check_branch
          %1210 = sbr.rel (%p1208) target = $region56
        $region55: #{tpu_custom_call.1} parent=51 // pred_region
          %s1211 = sand.u32 %s135, 1
          %s1212 = scalar_lea.sflag [#allocation4], %s1211
          %s1213 = sand.u32 %s135, 1
          %s1214 = smul.addr %s1213, 256
          %s1215 = scalar_lea.vmem [#allocation8], %s1214
          %1216 = dma.done %s1212, 4096
        $region56: #{tpu_custom_call.1} parent=51 // pred_fallthru
          _
      $region52: #{tpu_custom_call.1} parent=5 // pred_fallthru
        _
    $region6: #{tpu_custom_call.1} parent=1 // loop_footer
      %s22 = sadd.s32 1, %s18
    $region7: #{tpu_custom_call.1} parent=1 // loop_footer_branch
      %17 = sbr.rel target = $region3
    $region8: #{tpu_custom_call.1} parent=1 // loop_exit
      _
    %1217 = vsyncpa [#allocation3], 1
    %s1218 = scalar_lea.sflag [#allocation3], 1
    %1219 = vsyncpa %s1218, 1
    %1220 = vsyncpa [#allocation6], 1
    %s1221 = scalar_lea.sflag [#allocation6], 1
    %1222 = vsyncpa %s1221, 1
    %1223 = vsyncpa [#allocation4], 1
    %s1224 = scalar_lea.sflag [#allocation4], 1
    %1225 = vsyncpa %s1224, 1

</llo_original>
